<compile_context>
chip_gen: v7x
topology: tpu7x:2x2x1
jax: 0.10.0
libtpu: 0.0.40
codegen_flags: <defaults>
</compile_context>

<pallas_src>
import functools
import math

import jax
import jax.numpy as jnp
from jax import lax
from jax.experimental import pallas as pl
from jax.experimental.pallas import tpu as pltpu


def _vmem_capacity_bytes() -> int:
    """Physical VMEM of the local TPU; conservative 64 MiB (v7x) fallback."""
    try:
        return int(pltpu.get_tpu_info().vmem_capacity_bytes)
    except Exception:
        return 64 * 1024 * 1024


def _fold_kernel(x_ref, o_ref, *, s_tile, s_total, kc, ks, ragged, unroll):
    """x_ref: (1, f_tile, R, L)  all window rows for this (batch, f-tile).
       o_ref: (1, f_tile, s_tile, kc, L)  one S-tile of output windows."""
    s_base = pl.program_id(2) * s_tile

    def copy_window(i):
        start = (s_base + i) * ks
        if ks > 1:
            start = pl.multiple_of(start, ks)  # true assertion: start = s*ks
        # Sublane-granular dynamic slice; the lane axis (L) maps 1:1, so there
        # is no lane shift / relayout.  One store per window row-group.
        o_ref[0, :, i] = x_ref[0, :, pl.ds(start, kc), :]

    def body(i, carry):
        if ragged:
            @pl.when(s_base + i < s_total)
            def _():
                copy_window(i)
        else:
            copy_window(i)
        return carry

    lax.fori_loop(0, s_tile, body, 0, unroll=unroll)


def split_to_folds_pallas(data: jax.Array, chunk_size: int, step_size: int,
                          *, f_tile: int | None = None,
                          s_tile: int | None = None) -> jax.Array:
    """Pallas implementation of SplitToFolds.forward.

    Args:
      data: (B, F, T) array.
    Returns:
      (B, F, S, chunk_size) array with S = (T - chunk_size)//step_size + 1.
    """
    B, F, T = data.shape
    S = (T - chunk_size) // step_size + 1
    assert S >= 1, "ts must be >= chunk_size"
    itemsize = jnp.dtype(data.dtype).itemsize

    # Free row view of the time axis.
    L = math.gcd(chunk_size, step_size)
    kc = chunk_size // L
    ks = step_size // L
    t_used = (S - 1) * step_size + chunk_size  # always a multiple of L

    if T % L == 0:
        x_in = data                         # reshape below is free
    else:
        # TODO(synk): only hit when T was not pre-padded to the fold grid;
        # costs one input-sized copy (still far below rev-1's two transposes).
        x_in = data[:, :, :t_used]
    R = x_in.shape[-1] // L
    x_rows = x_in.reshape(B, F, R, L)

    # ---- byte-budgeted, generation-aware tiling ----
    vmem_cap = _vmem_capacity_bytes()
    budget = int(vmem_cap * 0.75)           # leave headroom under the cap
    in_per_f = R * L * itemsize             # input bytes per feature (1 buf)
    out_per_f_s = chunk_size * itemsize     # output bytes per feature/window

    ft = F
    while ft > 1 and 2 * ft * in_per_f > budget // 2:
        ft = (ft + 1) // 2
    target_out = max(512 * 1024, min(budget // 8, 8 * 1024 * 1024))
    st = max(1, min(S, target_out // max(1, ft * out_per_f_s)))

    def _need(ft_, st_):
        return 2 * ft_ * in_per_f + 2 * ft_ * st_ * out_per_f_s

    while st > 1 and _need(ft, st) > budget:
        st = (st + 1) // 2
    while ft > 1 and _need(ft, st) > budget:
        ft = (ft + 1) // 2

    if f_tile is not None:
        ft = f_tile
    if s_tile is not None:
        st = s_tile

    n_f = pl.cdiv(F, ft)
    n_s = pl.cdiv(S, st)
    ragged = (S % st) != 0
    unroll = st if st <= 8 else 8

    compiler_kwargs = dict(
        dimension_semantics=("parallel", "parallel", "parallel"))
    nb = _need(ft, st)
    if nb > 12 * 1024 * 1024:
        compiler_kwargs["vmem_limit_bytes"] = min(
            budget, max(2 * nb, 32 * 1024 * 1024))

    kernel = functools.partial(
        _fold_kernel, s_tile=st, s_total=S, kc=kc, ks=ks,
        ragged=ragged, unroll=unroll)

    bytes_accessed = (B * F * R * L + B * F * S * chunk_size) * itemsize

    out5 = pl.pallas_call(
        kernel,
        out_shape=jax.ShapeDtypeStruct((B, F, S, kc, L), data.dtype),
        grid=(B, n_f, n_s),
        # Input block constant along the (innermost) S axis -> fetched once
        # per (batch, f-tile) and reused across all S-tiles.
        in_specs=[pl.BlockSpec((1, ft, R, L), lambda b, f, s_: (b, f, 0, 0))],
        out_specs=pl.BlockSpec((1, ft, st, kc, L),
                               lambda b, f, s_: (b, f, s_, 0, 0)),
        compiler_params=pltpu.CompilerParams(**compiler_kwargs),
        cost_estimate=pl.CostEstimate(flops=0, transcendentals=0,
                                      bytes_accessed=bytes_accessed),
    )(x_rows)

    # Free merge of the (kc, L) split back to chunk_size -> PyTorch layout.
    return out5.reshape(B, F, S, chunk_size)


def split_to_folds_ref(data: jax.Array, chunk_size: int, step_size: int) -> jax.Array:
    """Pure-JAX reference matching the PyTorch module exactly."""
    B, F, T = data.shape
    S = (T - chunk_size) // step_size + 1
    return jnp.stack(
        [data[:, :, s * step_size: s * step_size + chunk_size] for s in range(S)],
        axis=2,
    )


if __name__ == "__main__":
    # Small deterministic example consistent with the module's forward:
    # batch=2, num_features=4, ts=16, chunk_size=8, step_size=4  ->  S = 3
    key = jax.random.PRNGKey(0)
    B, F, T = 2, 4, 16
    chunk_size, step_size = 8, 4

    data = jax.random.normal(key, (B, F, T), dtype=jnp.float32)
    ref = split_to_folds_ref(data, chunk_size, step_size)

    out = split_to_folds_pallas(data, chunk_size, step_size)
    out = jax.block_until_ready(out)

    expected_S = (T - chunk_size) // step_size + 1
    assert out.shape == (B, F, expected_S, chunk_size), out.shape
    assert out.dtype == data.dtype
    assert jnp.array_equal(out, ref), "Pallas output does not match reference"

    # Exercise the multi-tile path: F tiled in two, ragged last S-tile
    # (S=3, s_tile=2) so the pl.when tail guard and block clipping run too.
    out2 = split_to_folds_pallas(data, chunk_size, step_size, f_tile=2, s_tile=2)
    out2 = jax.block_until_ready(out2)
    assert jnp.array_equal(out2, ref), "Tiled Pallas output does not match reference"

    print("KERNEL_OK")
</pallas_src>

<mosaic_0001>
module attributes {stable_mosaic.version = 11 : i64} {
  func.func @_fold_kernel(%arg0: i32, %arg1: i32, %arg2: i32, %arg3: memref<1x4x4x4xf32, #tpu.memory_space<vmem>>, %arg4: memref<1x4x3x2x4xf32, #tpu.memory_space<vmem>>) attributes {dimension_semantics = [#tpu.dimension_semantics<parallel>, #tpu.dimension_semantics<parallel>, #tpu.dimension_semantics<parallel>], iteration_bounds = array<i64: 2, 1, 1>, scalar_prefetch = 0 : i64, scratch_operands = 0 : i64, tpu.core_type = #tpu.core_type<tc>, window_params = [{transform_indices = @transform_0, window_bounds = array<i64: 1, 4, 4, 4>}, {transform_indices = @transform_1, window_bounds = array<i64: 1, 4, 3, 2, 4>}]} {
    %c3_i32 = arith.constant 3 : i32
    %0 = arith.muli %arg2, %c3_i32 : i32
    %c0_i32 = arith.constant 0 : i32
    %1 = arith.addi %0, %c0_i32 : i32
    %c1_i32 = arith.constant 1 : i32
    %2 = arith.muli %1, %c1_i32 : i32
    %c0 = arith.constant 0 : index
    %c0_0 = arith.constant 0 : index
    %3 = arith.index_cast %2 : i32 to index
    %c0_1 = arith.constant 0 : index
    %4 = vector.load %arg3[%c0, %c0_0, %3, %c0_1] : memref<1x4x4x4xf32, #tpu.memory_space<vmem>>, vector<1x4x2x4xf32>
    %5 = vector.shape_cast %4 : vector<1x4x2x4xf32> to vector<4x2x4xf32>
    %c0_2 = arith.constant 0 : index
    %c0_3 = arith.constant 0 : index
    %6 = arith.index_cast %c0_i32 : i32 to index
    %c0_4 = arith.constant 0 : index
    %c0_5 = arith.constant 0 : index
    %7 = vector.load %arg4[%c0_2, %c0_3, %6, %c0_4, %c0_5] : memref<1x4x3x2x4xf32, #tpu.memory_space<vmem>>, vector<1x4x1x2x4xf32>
    %8 = vector.shape_cast %7 : vector<1x4x1x2x4xf32> to vector<4x2x4xf32>
    %9 = vector.shape_cast %5 : vector<4x2x4xf32> to vector<1x4x1x2x4xf32>
    tpu.vector_store %arg4[%c0_2, %c0_3, %6, %c0_4, %c0_5], %9 {strides = array<i32>} : memref<1x4x3x2x4xf32, #tpu.memory_space<vmem>>, vector<1x4x1x2x4xf32>,
    %c1_i32_6 = arith.constant 1 : i32
    %10 = arith.addi %0, %c1_i32_6 : i32
    %c1_i32_7 = arith.constant 1 : i32
    %11 = arith.muli %10, %c1_i32_7 : i32
    %c0_8 = arith.constant 0 : index
    %c0_9 = arith.constant 0 : index
    %12 = arith.index_cast %11 : i32 to index
    %c0_10 = arith.constant 0 : index
    %13 = vector.load %arg3[%c0_8, %c0_9, %12, %c0_10] : memref<1x4x4x4xf32, #tpu.memory_space<vmem>>, vector<1x4x2x4xf32>
    %14 = vector.shape_cast %13 : vector<1x4x2x4xf32> to vector<4x2x4xf32>
    %c0_11 = arith.constant 0 : index
    %c0_12 = arith.constant 0 : index
    %15 = arith.index_cast %c1_i32_6 : i32 to index
    %c0_13 = arith.constant 0 : index
    %c0_14 = arith.constant 0 : index
    %16 = vector.load %arg4[%c0_11, %c0_12, %15, %c0_13, %c0_14] : memref<1x4x3x2x4xf32, #tpu.memory_space<vmem>>, vector<1x4x1x2x4xf32>
    %17 = vector.shape_cast %16 : vector<1x4x1x2x4xf32> to vector<4x2x4xf32>
    %18 = vector.shape_cast %14 : vector<4x2x4xf32> to vector<1x4x1x2x4xf32>
    tpu.vector_store %arg4[%c0_11, %c0_12, %15, %c0_13, %c0_14], %18 {strides = array<i32>} : memref<1x4x3x2x4xf32, #tpu.memory_space<vmem>>, vector<1x4x1x2x4xf32>,
    %c2_i32 = arith.constant 2 : i32
    %19 = arith.addi %0, %c2_i32 : i32
    %c1_i32_15 = arith.constant 1 : i32
    %20 = arith.muli %19, %c1_i32_15 : i32
    %c0_16 = arith.constant 0 : index
    %c0_17 = arith.constant 0 : index
    %21 = arith.index_cast %20 : i32 to index
    %c0_18 = arith.constant 0 : index
    %22 = vector.load %arg3[%c0_16, %c0_17, %21, %c0_18] : memref<1x4x4x4xf32, #tpu.memory_space<vmem>>, vector<1x4x2x4xf32>
    %23 = vector.shape_cast %22 : vector<1x4x2x4xf32> to vector<4x2x4xf32>
    %c0_19 = arith.constant 0 : index
    %c0_20 = arith.constant 0 : index
    %24 = arith.index_cast %c2_i32 : i32 to index
    %c0_21 = arith.constant 0 : index
    %c0_22 = arith.constant 0 : index
    %25 = vector.load %arg4[%c0_19, %c0_20, %24, %c0_21, %c0_22] : memref<1x4x3x2x4xf32, #tpu.memory_space<vmem>>, vector<1x4x1x2x4xf32>
    %26 = vector.shape_cast %25 : vector<1x4x1x2x4xf32> to vector<4x2x4xf32>
    %27 = vector.shape_cast %23 : vector<4x2x4xf32> to vector<1x4x1x2x4xf32>
    tpu.vector_store %arg4[%c0_19, %c0_20, %24, %c0_21, %c0_22], %27 {strides = array<i32>} : memref<1x4x3x2x4xf32, #tpu.memory_space<vmem>>, vector<1x4x1x2x4xf32>,
    %c3_i32_23 = arith.constant 3 : i32
    return
  }
  func.func @transform_0(%arg0: i32, %arg1: i32, %arg2: i32) -> (i32, i32, i32, i32) {
    %c0_i32 = arith.constant 0 : i32
    %c0_i32_0 = arith.constant 0 : i32
    %c0_i32_1 = arith.constant 0 : i32
    return %arg0, %arg1, %c0_i32, %c0_i32_0 : i32, i32, i32, i32
  }
  func.func @transform_1(%arg0: i32, %arg1: i32, %arg2: i32) -> (i32, i32, i32, i32, i32) {
    %c0_i32 = arith.constant 0 : i32
    %c0_i32_0 = arith.constant 0 : i32
    %c0_i32_1 = arith.constant 0 : i32
    return %arg0, %arg1, %arg2, %c0_i32, %c0_i32_0 : i32, i32, i32, i32, i32
  }
}

</mosaic_0001>

<llo_original>
// kernel: tpu_custom_call.1
$region0: #{tpu_custom_call.1}
  #allocation0 [shape = 'u32[]', space=smem, size = 0x4, offset = 0x4, fixed_abs, tag = 'smem constant byte address 0x4 - core index']
  #allocation1 [shape = 'u32[144,128]{1,0:T(1,128)}', space=vmem, size = 0x12000, scoped, tag = 'internal scratch']
  %s0 = inlined_call_operand.hbm [shape: f32[2,4,4,4], index: 0, kind: input, shape index: {}]
  %s1 = inlined_call_operand.hbm [shape: f32[2,4,3,2,4], index: 1, kind: output, shape index: {}]
  %s2 = sld [smem:[#allocation0]]
  $region41: #{tpu_custom_call.1} parent=0
    _
  %s4 = ssub.s32 1, %s2
  %s5 = scalar_select 0, %s4, %s2
  $region1: #{tpu_custom_call.1} parent=0
    #allocation2 [shape = 'u8[16384]{0}', space=vmem, size = 0x4000, scoped, tag = 'input window, operand 0']
    #allocation3 [shape = 's32[2]{0}', space=sflag, size = 0x8, scoped, tag = 'scoped memory for tpu_custom_call.1']
    #allocation4 [shape = 's32[2]{0}', space=sflag, size = 0x8, scoped, tag = 'scoped memory for tpu_custom_call.1']
    #allocation5 [shape = 'u8[24576]{0}', space=vmem, size = 0x6000, scoped, tag = 'output window, operand 0']
    %6 = vsyncpa [#allocation3], 0
    %s7 = scalar_lea.sflag [#allocation3], 1
    %8 = vsyncpa %s7, 0
    %9 = vsyncpa [#allocation4], 0
    %s10 = scalar_lea.sflag [#allocation4], 1
    %11 = vsyncpa %s10, 0
    loop: start=0, step=1, limit=4
    $region2: #{tpu_custom_call.1} parent=1 // loop_pre_header
      _
    $region3: #{tpu_custom_call.1} parent=1 // loop_header
      %s13 = sphi 0, %s17
      %p14 = scmp.ge.s32.totalorder %s13, 4
      %s20 = sphi 0, %s39
      %s21 = sphi 0, %s35
      %s22 = sphi 0, %s31
      %s23 = sphi 0, %s20
      %s24 = sphi 0, %s21
      %s25 = sphi 0, %s22
      %s26 = sphi 0, %s23
      %s27 = sphi 0, %s24
      %s28 = sphi 0, %s25
      %s44 = sphi 0, %s46
      %s47 = sphi 0, %s44
      %s48 = sphi 0, %s47
      %s64 = sphi 0, %s48
      %s74 = sphi 0, %s76
      %s77 = sphi 0, %s74
      %s78 = sphi 0, %s77
      %s94 = sphi 0, %s78
    $region4: #{tpu_custom_call.1} parent=1 // loop_header_branch
      %16 = sbr.rel (%p14) target = $region8
    $region5: #{tpu_custom_call.1} parent=1 // loop_body
      %s18 = ssub.s32 %s13, 1
      %s19 = ssub.s32 %s13, 2
      %s29 = sadd.s32 1, %s22
      %p30 = scmp.ge.s32.totalorder %s29, 1
      %s31 = scalar_select %p30, 0, %s29
      %s32 = sadd.s32 1, %s21
      %s33 = scalar_select %p30, %s32, %s21
      %p34 = scmp.ge.s32.totalorder %s33, 1
      %s35 = scalar_select %p34, 0, %s33
      %s36 = sadd.s32 1, %s20
      %s37 = scalar_select %p34, %s36, %s20
      %p38 = scmp.ge.s32.totalorder %s37, 2
      %s39 = scalar_select %p38, 0, %s37
      %s40 = ssub.s32 %s20, %s39
      %s41 = ssub.s32 %s21, %s35
      %s42 = sor.u32 %s40, %s41
      %p43 = scmp.eq.s32.totalorder %s42, 0
      %s45 = sadd.s32 %s44, 1
      %s46 = scalar_select %p43, %s44, %s45
      %p49 = pneg %p43
      %p50 = scmp.eq.s32.totalorder %s13, 1
      %p51 = por %p49, %p50
      %p52 = scmp.ne.s32.totalorder %s44, %s47
      %p53 = scmp.eq.s32.totalorder %s13, 0
      %p54 = por %p52, %p53
      %p55 = scmp.ne.s32.totalorder %s44, %s47
      %p56 = scmp.eq.s32.totalorder %s18, 1
      %p57 = por %p55, %p56
      %p58 = scmp.ne.s32.totalorder %s47, %s48
      %p59 = scmp.eq.s32.totalorder %s18, 0
      %p60 = por %p58, %p59
      %p61 = scmp.ne.s32.totalorder %s47, %s48
      %p62 = scmp.eq.s32.totalorder %s19, 1
      %p63 = por %p61, %p62
      %p65 = scmp.ne.s32.totalorder %s48, %s64
      %p66 = scmp.eq.s32.totalorder %s19, 0
      %p67 = por %p65, %p66
      %s68 = ssub.s32 %s20, %s39
      %s69 = ssub.s32 %s21, %s35
      %s70 = sor.u32 %s68, %s69
      %s71 = ssub.s32 %s22, %s31
      %s72 = sor.u32 %s70, %s71
      %p73 = scmp.eq.s32.totalorder %s72, 0
      %s75 = sadd.s32 %s74, 1
      %s76 = scalar_select %p73, %s74, %s75
      %p79 = pneg %p73
      %p80 = scmp.eq.s32.totalorder %s13, 1
      %p81 = por %p79, %p80
      %p82 = scmp.ne.s32.totalorder %s74, %s77
      %p83 = scmp.eq.s32.totalorder %s13, 0
      %p84 = por %p82, %p83
      %p85 = scmp.ne.s32.totalorder %s74, %s77
      %p86 = scmp.eq.s32.totalorder %s18, 1
      %p87 = por %p85, %p86
      %p88 = scmp.ne.s32.totalorder %s77, %s78
      %p89 = scmp.eq.s32.totalorder %s18, 0
      %p90 = por %p88, %p89
      %p91 = scmp.ne.s32.totalorder %s77, %s78
      %p92 = scmp.eq.s32.totalorder %s19, 1
      %p93 = por %p91, %p92
      %p95 = scmp.ne.s32.totalorder %s78, %s94
      %p96 = scmp.eq.s32.totalorder %s19, 0
      %p97 = por %p95, %p96
      %p98 = scmp.le.s32.totalorder 1, %s13
      %p99 = scmp.lt.s32.totalorder %s13, 3
      %p100 = pnand %p98, %p99
      %p101 = pneg %p100
      // Predicated region
      $region9: #{tpu_custom_call.1} parent=5 // pred_check
        _
      $region10: #{tpu_custom_call.1} parent=5 // pred_check_branch
        %103 = sbr.rel (%p100) target = $region12
      $region11: #{tpu_custom_call.1} parent=5 // pred_region
        %s104 = ssub.s32 %s13, 1
      $region12: #{tpu_custom_call.1} parent=5 // pred_fallthru
        _
      %p105 = scmp.lt.s32.totalorder %s13, 2
      // Predicated region
      $region13: #{tpu_custom_call.1} parent=5 // pred_check
        %p106 = pneg %p105
      $region14: #{tpu_custom_call.1} parent=5 // pred_check_branch
        %108 = sbr.rel (%p106) target = $region16
      $region15: #{tpu_custom_call.1} parent=5 // pred_region
        // Predicated region
        $region17: #{tpu_custom_call.1} parent=15 // pred_check
          %p109 = pneg %p54
        $region18: #{tpu_custom_call.1} parent=15 // pred_check_branch
          %111 = sbr.rel (%p109) target = $region20
        $region19: #{tpu_custom_call.1} parent=15 // pred_region
          %s112 = sand.u32 %s44, 1
          %s113 = scalar_lea.sflag [#allocation3], %s112
          %s114 = sand.u32 %s44, 1
          %s115 = smul.addr %s114, 16
          %s116 = scalar_lea.vmem [#allocation2], %s115
          %s117 = smul.u32 4, %s21
          %s119 = ssub.s32 256, 256
          %120 = vsyncadd %s113, %s119
          %s121 = smul.addr %s20, 4
          %s122 = sadd.s32 %s117, %s121
          %s123 = smul.addr %s122, 64
          %s124 = scalar_lea.hbm %s0, %s123
          %s125 = sshll.u32 %s116, 4
          %s126 = int_to_ptr.vmem [resolvable:$true] %s125
          %131 = dma.hbm_to_vmem [thread:$0]  %s124, 256, %s126, %s113, 64, 64, 4
        $region20: #{tpu_custom_call.1} parent=15 // pred_fallthru
          _
      $region16: #{tpu_custom_call.1} parent=5 // pred_fallthru
        _
      %p132 = scmp.le.s32.totalorder 1, %s13
      %p133 = scmp.lt.s32.totalorder %s13, 3
      %p134 = pnand %p132, %p133
      %p135 = pneg %p134
      // Predicated region
      $region21: #{tpu_custom_call.1} parent=5 // pred_check
        _
      $region22: #{tpu_custom_call.1} parent=5 // pred_check_branch
        %137 = sbr.rel (%p134) target = $region24
      $region23: #{tpu_custom_call.1} parent=5 // pred_region
        %s138 = ssub.s32 %s13, 1
        %s139 = sand.u32 %s47, 1
        %s140 = scalar_lea.sflag [#allocation3], %s139
        %s141 = sand.u32 %s47, 1
        %s142 = smul.addr %s141, 16
        %s143 = scalar_lea.vmem [#allocation2], %s142
        // Predicated region
        $region25: #{tpu_custom_call.1} parent=23 // pred_check
          %p144 = pneg %p60
        $region26: #{tpu_custom_call.1} parent=23 // pred_check_branch
          %146 = sbr.rel (%p144) target = $region28
        $region27: #{tpu_custom_call.1} parent=23 // pred_region
          %147 = dma.done %s140, 256
        $region28: #{tpu_custom_call.1} parent=23 // pred_fallthru
          _
        %s148 = sand.u32 %s47, 1
        %s149 = scalar_lea.sflag [#allocation3], %s148
        %s150 = sand.u32 %s47, 1
        %s151 = smul.addr %s150, 16
        %s152 = scalar_lea.vmem [#allocation2], %s151
        %p153 = pneg %p60
        %p154 = pneg %p57
        %p155 = pneg %p90
        %p156 = pneg %p87
        %s157 = sand.u32 %s77, 1
        %s158 = scalar_lea.sflag [#allocation4], %s157
        %s159 = sand.u32 %s77, 1
        %s160 = smul.addr %s159, 24
        %s161 = scalar_lea.vmem [#allocation5], %s160
        %s162 = smul.u32 4, %s24
        %s163 = smul.u32 4, %s24
        %s164 = smul.u32 3, %s25
        %s165 = smul.u32 %s25, 3
        %s166 = scalar_lea.vmem %s143, %s165 [#allocation2]
        %v167 = vld [vmem:[%s166] sm:$0x3]
        %v168 = vld [vmem:[%s166 + $0x4] sm:$0x3]
        %v169 = vld [vmem:[%s166 + $0x8] sm:$0x3]
        %v170 = vld [vmem:[%s166 + $0xc] sm:$0x3]
        %vm171 = vcmask 25600
        %172 = vst.msk [vmem:[%s161] sm:$0x3] %vm171, %v167
        %173 = vst.msk [vmem:[%s161 + $0x6] sm:$0x3] %vm171, %v168
        %174 = vst.msk [vmem:[%s161 + $0xc] sm:$0x3] %vm171, %v169
        %175 = vst.msk [vmem:[%s161 + $0x12] sm:$0x3] %vm171, %v170
        %s176 = sadd.s32 %s165, 1
        %s177 = scalar_lea.vmem %s143, %s176 [#allocation2]
        %v178 = vld [vmem:[%s177] sm:$0x3]
        %v179 = vld [vmem:[%s177 + $0x4] sm:$0x3]
        %v180 = vld [vmem:[%s177 + $0x8] sm:$0x3]
        %v181 = vld [vmem:[%s177 + $0xc] sm:$0x3]
        %s182 = scalar_lea.vmem %s161, 2 [#allocation5]
        %183 = vst.msk [vmem:[%s182] sm:$0x3] %vm171, %v178
        %184 = vst.msk [vmem:[%s182 + $0x6] sm:$0x3] %vm171, %v179
        %185 = vst.msk [vmem:[%s182 + $0xc] sm:$0x3] %vm171, %v180
        %186 = vst.msk [vmem:[%s182 + $0x12] sm:$0x3] %vm171, %v181
        %s187 = sadd.s32 %s165, 2
        %s188 = scalar_lea.vmem %s143, %s187 [#allocation2]
        %v189 = vld [vmem:[%s188] sm:$0x3]
        %v190 = vld [vmem:[%s188 + $0x4] sm:$0x3]
        %v191 = vld [vmem:[%s188 + $0x8] sm:$0x3]
        %v192 = vld [vmem:[%s188 + $0xc] sm:$0x3]
        %s193 = scalar_lea.vmem %s161, 4 [#allocation5]
        %194 = vst.msk [vmem:[%s193] sm:$0x3] %vm171, %v189
        %195 = vst.msk [vmem:[%s193 + $0x6] sm:$0x3] %vm171, %v190
        %196 = vst.msk [vmem:[%s193 + $0xc] sm:$0x3] %vm171, %v191
        %197 = vst.msk [vmem:[%s193 + $0x12] sm:$0x3] %vm171, %v192
        %s198 = sand.u32 %s77, 1
        %s199 = scalar_lea.sflag [#allocation4], %s198
        %s200 = sand.u32 %s77, 1
        %s201 = smul.addr %s200, 24
        %s202 = scalar_lea.vmem [#allocation5], %s201
        // Predicated region
        $region29: #{tpu_custom_call.1} parent=23 // pred_check
          %p203 = pneg %p87
        $region30: #{tpu_custom_call.1} parent=23 // pred_check_branch
          %205 = sbr.rel (%p203) target = $region32
        $region31: #{tpu_custom_call.1} parent=23 // pred_region
          %s206 = smul.u32 4, %s24
          %s207 = smul.u32 3, %s25
          %s209 = ssub.s32 384, 384
          %210 = vsyncadd %s199, %s209
          %s211 = smul.addr %s206, 3
          %s212 = sadd.s32 %s207, %s211
          %s213 = smul.addr %s23, 12
          %s214 = sadd.s32 %s212, %s213
          %s215 = smul.addr %s214, 32
          %s216 = scalar_lea.hbm %s1, %s215
          %s217 = sshll.u32 %s202, 4
          %s218 = int_to_ptr.vmem [resolvable:$true] %s217
          %223 = dma.vmem_to_hbm [thread:$0]  %s218, 384, %s216, %s199, 32, 32, 2
        $region32: #{tpu_custom_call.1} parent=23 // pred_fallthru
          _
      $region24: #{tpu_custom_call.1} parent=5 // pred_fallthru
        _
      %p224 = scmp.le.s32.totalorder 2, %s13
      // Predicated region
      $region33: #{tpu_custom_call.1} parent=5 // pred_check
        %p225 = pneg %p224
      $region34: #{tpu_custom_call.1} parent=5 // pred_check_branch
        %227 = sbr.rel (%p225) target = $region36
      $region35: #{tpu_custom_call.1} parent=5 // pred_region
        %s228 = ssub.s32 %s13, 2
        // Predicated region
        $region37: #{tpu_custom_call.1} parent=35 // pred_check
          %p229 = pneg %p93
        $region38: #{tpu_custom_call.1} parent=35 // pred_check_branch
          %231 = sbr.rel (%p229) target = $region40
        $region39: #{tpu_custom_call.1} parent=35 // pred_region
          %s232 = sand.u32 %s78, 1
          %s233 = scalar_lea.sflag [#allocation4], %s232
          %s234 = sand.u32 %s78, 1
          %s235 = smul.addr %s234, 24
          %s236 = scalar_lea.vmem [#allocation5], %s235
          %237 = dma.done %s233, 384
        $region40: #{tpu_custom_call.1} parent=35 // pred_fallthru
          _
      $region36: #{tpu_custom_call.1} parent=5 // pred_fallthru
        _
    $region6: #{tpu_custom_call.1} parent=1 // loop_footer
      %s17 = sadd.s32 1, %s13
    $region7: #{tpu_custom_call.1} parent=1 // loop_footer_branch
      %12 = sbr.rel target = $region3
    $region8: #{tpu_custom_call.1} parent=1 // loop_exit
      _
    %238 = vsyncpa [#allocation3], 1
    %s239 = scalar_lea.sflag [#allocation3], 1
    %240 = vsyncpa %s239, 1
    %241 = vsyncpa [#allocation4], 1
    %s242 = scalar_lea.sflag [#allocation4], 1
    %243 = vsyncpa %s242, 1

</llo_original>
